<compile_context>
chip_gen: v7x
topology: tpu7x:2x2x1
jax: 0.10.0
libtpu: 0.0.40
codegen_flags: <defaults>
</compile_context>

<pallas_src>
import functools

import jax
import jax.numpy as jnp
from jax import lax
from jax.experimental import pallas as pl
from jax.experimental.pallas import tpu as pltpu

EPS = 1e-5  # nn.BatchNorm2d default eps


# ----------------------------- Pallas kernel ------------------------------- #

def basic_block_kernel(x_ref, B1_ref, g1_ref, b1_ref, B2_ref, g2_ref, b2_ref,
                       out_ref, xpad_ref, *, N, H, W, C):
    """Fused BasicBlock forward.

    x_ref   : (N, H, W*C)        f32, lane-packed NHWC activation.
    B{1,2}  : (3*W*C, W*C)       bf16 banded conv weights (kernel rows stacked along K).
    g/b     : (1, W*C)           f32 gamma/beta pre-tiled into the packed-lane layout.
    out_ref : (N, H, W*C)        f32.
    xpad_ref: (N, H+2, W*C)      bf16 VMEM scratch: vertically zero-padded activation.
    """
    WC = W * C
    NH = N * H
    inv_n = jnp.float32(1.0 / (N * H * W))
    w_pow2 = (W & (W - 1)) == 0

    def pool_lanes(row):
        # row: (1, WC) f32, lane j = spatial x = j // C, channel c = j % C.
        # Returns per-channel totals broadcast back into every lane of that channel.
        if w_pow2:
            r = row
            s = C
            while s < WC:                      # log2(W) XLU lane rotations + adds
                r = r + pltpu.roll(r, shift=s, axis=1)
                s *= 2
            return r
        # Fallback (non power-of-two W): tiny (1,WC)x(WC,WC) pooling matmul.
        li = lax.broadcasted_iota(jnp.int32, (WC, WC), 0)
        lj = lax.broadcasted_iota(jnp.int32, (WC, WC), 1)
        pool = ((li % C) == (lj % C)).astype(jnp.float32)
        return jnp.dot(row, pool, preferred_element_type=jnp.float32)

    def conv3x3_bn(B_ref, gamma_ref, beta_ref):
        # 3x3 'same' conv (stride 1, no bias) as ONE lane-dense MXU matmul with K = 3*WC:
        # the 3 vertically shifted bf16 slices concatenated along K; the 3 horizontal taps
        # plus horizontal zero padding are folded into the banded weight matrix.
        xs = jnp.concatenate(
            [xpad_ref[:, dy:dy + H, :] for dy in range(3)], axis=-1
        ).reshape(NH, 3 * WC)                                           # bf16
        acc = jnp.dot(xs, B_ref[...], preferred_element_type=jnp.float32)   # (NH, WC) f32

        # BatchNorm2d with batch statistics (biased variance), centered two-pass form.
        mean_p = pool_lanes(jnp.sum(acc, axis=0, keepdims=True)) * inv_n     # (1, WC)
        d = acc - mean_p
        var_p = pool_lanes(jnp.sum(d * d, axis=0, keepdims=True)) * inv_n    # (1, WC)
        scale_p = lax.rsqrt(var_p + EPS) * gamma_ref[...]                    # (1, WC)
        return d * scale_p + beta_ref[...]                                   # (NH, WC)

    x3 = x_ref[...]                                                     # (N, H, WC) f32

    # Zero only the two halo rows once; the interior is always written before it is read.
    zrow = jnp.zeros((N, 1, WC), xpad_ref.dtype)
    xpad_ref[:, 0:1, :] = zrow
    xpad_ref[:, H + 1:H + 2, :] = zrow

    # stage 1: h = relu(bn1(conv1(x)))  (single f32->bf16 cast at the write)
    xpad_ref[:, 1:H + 1, :] = x3.astype(xpad_ref.dtype)
    h = jnp.maximum(conv3x3_bn(B1_ref, g1_ref, b1_ref), 0.0)            # (NH, WC) f32

    # stage 2: out = relu(bn2(conv2(h)) + x), all still resident in VMEM.
    xpad_ref[:, 1:H + 1, :] = h.reshape(N, H, WC).astype(xpad_ref.dtype)
    o = conv3x3_bn(B2_ref, g2_ref, b2_ref) + x3.reshape(NH, WC)         # residual (identity)
    out_ref[...] = jnp.maximum(o, 0.0).reshape(N, H, WC)


# ------------------------------- wrapper ----------------------------------- #

def _band_weights(w, W):
    """Fold the 3 horizontal taps + horizontal zero padding of a 3x3 HWIO weight into one
    banded block matrix, with the 3 kernel rows stacked along K:
        B[dy*W*Cin + xi*Cin + ci, xo*Cout + co] = w[dy, xi - xo + 1, ci, co] if |xi-xo|<=1 else 0
    Returns (3*W*Cin, W*Cout) bf16 (MXU-native)."""
    kh, kw, Cin, Cout = w.shape
    xi = jnp.arange(W)[None, :, None]
    xo = jnp.arange(W)[None, None, :]
    dx = (jnp.arange(kw) - 1)[:, None, None]
    M = (xi - xo == dx).astype(w.dtype)                 # (kw, W, W)
    B = jnp.einsum("dio,kdab->kiaob", M, w)             # (kh, W, Cin, W, Cout)
    return B.reshape(kh * W * Cin, W * Cout).astype(jnp.bfloat16)


def _vmem_spec():
    return pl.BlockSpec(memory_space=pltpu.MemorySpace.VMEM)


def basic_block_forward(x, params):
    """x: (N, H, W, C) NHWC float32.  stride=1, downsample=None (module defaults)."""
    N, H, W, C = x.shape
    w1, g1, b1 = params["w1"], params["g1"], params["b1"]
    w2, g2, b2 = params["w2"], params["g2"], params["b2"]
    Cout = w1.shape[-1]            # == C for the residual path
    WC = W * C
    assert Cout == C and w2.shape[-1] == C, "identity residual requires planes == inplanes"
    assert WC % 128 == 0, "lane-dense packing assumes W*C is a multiple of 128"

    # One-time weight / affine-parameter preprocessing (glue on parameters only).
    B1 = _band_weights(w1, W)                                      # (3*W*C, W*C) bf16
    B2 = _band_weights(w2, W)
    pack = lambda v: jnp.tile(v.reshape(1, Cout).astype(jnp.float32), (1, W))  # (1, W*C)
    g1p, b1p, g2p, b2p = pack(g1), pack(b1), pack(g2), pack(b2)

    x_p = x.reshape(N, H, WC)      # lane-packed activation (row-major metadata only)

    kernel = functools.partial(basic_block_kernel, N=N, H=H, W=W, C=C)
    out_p = pl.pallas_call(
        kernel,
        out_shape=jax.ShapeDtypeStruct((N, H, W * Cout), jnp.float32),
        in_specs=[_vmem_spec() for _ in range(7)],
        out_specs=_vmem_spec(),
        scratch_shapes=[pltpu.VMEM((N, H + 2, WC), jnp.bfloat16)],
        compiler_params=pltpu.CompilerParams(vmem_limit_bytes=4 * 1024 * 1024),
    )(x_p, B1, g1p, b1p, B2, g2p, b2p)
    return out_p.reshape(N, H, W, Cout)


# --------------------------- pure-JAX reference ----------------------------- #

def _conv3x3_ref(x, w):
    return lax.conv_general_dilated(
        x, w, window_strides=(1, 1), padding=((1, 1), (1, 1)),
        dimension_numbers=("NHWC", "HWIO", "NHWC"))


def _bn_ref(x, g, b):
    mean = jnp.mean(x, axis=(0, 1, 2), keepdims=True)
    var = jnp.mean((x - mean) ** 2, axis=(0, 1, 2), keepdims=True)
    return (x - mean) * lax.rsqrt(var + EPS) * g + b


def basic_block_ref(x, p):
    h = jax.nn.relu(_bn_ref(_conv3x3_ref(x, p["w1"]), p["g1"], p["b1"]))
    o = _bn_ref(_conv3x3_ref(h, p["w2"]), p["g2"], p["b2"]) + x
    return jax.nn.relu(o)


# ---------------------------------- main ------------------------------------ #

if __name__ == "__main__":
    key = jax.random.PRNGKey(0)
    N, H, W, C = 2, 16, 16, 8   # inplanes = planes = 8, W*C = 128 (lane-dense)
    ks = jax.random.split(key, 7)

    x = jax.random.normal(ks[0], (N, H, W, C), jnp.float32)
    params = dict(
        w1=0.1 * jax.random.normal(ks[1], (3, 3, C, C), jnp.float32),   # conv1 HWIO
        g1=1.0 + 0.1 * jax.random.normal(ks[2], (C,), jnp.float32),     # bn1 gamma
        b1=0.1 * jax.random.normal(ks[3], (C,), jnp.float32),           # bn1 beta
        w2=0.1 * jax.random.normal(ks[4], (3, 3, C, C), jnp.float32),   # conv2 HWIO
        g2=1.0 + 0.1 * jax.random.normal(ks[5], (C,), jnp.float32),     # bn2 gamma
        b2=0.1 * jax.random.normal(ks[6], (C,), jnp.float32),           # bn2 beta
    )

    out = jax.jit(basic_block_forward)(x, params)
    jax.block_until_ready(out)

    ref = basic_block_ref(x, params)
    max_err = float(jnp.max(jnp.abs(out - ref)))
    assert out.shape == (N, H, W, C)
    # bf16 MXU operands (f32 reference): tolerance loosened accordingly.
    assert jnp.allclose(out, ref, atol=5e-2, rtol=5e-2), f"max |err| = {max_err}"
    print("KERNEL_OK")
</pallas_src>

<mosaic_0001>
module attributes {stable_mosaic.version = 11 : i64} {
  func.func @basic_block_kernel(%arg0: memref<2x16x128xf32, #tpu.memory_space<vmem>>, %arg1: memref<384x128xbf16, #tpu.memory_space<vmem>>, %arg2: memref<1x128xf32, #tpu.memory_space<vmem>>, %arg3: memref<1x128xf32, #tpu.memory_space<vmem>>, %arg4: memref<384x128xbf16, #tpu.memory_space<vmem>>, %arg5: memref<1x128xf32, #tpu.memory_space<vmem>>, %arg6: memref<1x128xf32, #tpu.memory_space<vmem>>, %arg7: memref<2x16x128xf32, #tpu.memory_space<vmem>>, %arg8: memref<2x18x128xbf16, #tpu.memory_space<vmem>>) attributes {dimension_semantics = [], scalar_prefetch = 0 : i64, scratch_operands = 1 : i64, tpu.core_type = #tpu.core_type<tc>} {
    %c0 = arith.constant 0 : index
    %c0_0 = arith.constant 0 : index
    %c0_1 = arith.constant 0 : index
    %0 = vector.load %arg0[%c0, %c0_0, %c0_1] : memref<2x16x128xf32, #tpu.memory_space<vmem>>, vector<2x16x128xf32>
    %cst = arith.constant 0.000000e+00 : bf16
    %1 = vector.broadcast %cst : bf16 to vector<2x1x128xbf16>
    %c0_2 = arith.constant 0 : index
    %c0_3 = arith.constant 0 : index
    %c0_4 = arith.constant 0 : index
    %2 = vector.load %arg8[%c0_2, %c0_3, %c0_4] : memref<2x18x128xbf16, #tpu.memory_space<vmem>>, vector<2x1x128xbf16>
    tpu.vector_store %arg8[%c0_2, %c0_3, %c0_4], %1 {strides = array<i32>} : memref<2x18x128xbf16, #tpu.memory_space<vmem>>, vector<2x1x128xbf16>,
    %c0_5 = arith.constant 0 : index
    %c17 = arith.constant 17 : index
    %c0_6 = arith.constant 0 : index
    %3 = vector.load %arg8[%c0_5, %c17, %c0_6] : memref<2x18x128xbf16, #tpu.memory_space<vmem>>, vector<2x1x128xbf16>
    tpu.vector_store %arg8[%c0_5, %c17, %c0_6], %1 {strides = array<i32>} : memref<2x18x128xbf16, #tpu.memory_space<vmem>>, vector<2x1x128xbf16>,
    %4 = arith.truncf %0 : vector<2x16x128xf32> to vector<2x16x128xbf16>
    %c0_7 = arith.constant 0 : index
    %c1 = arith.constant 1 : index
    %c0_8 = arith.constant 0 : index
    %5 = vector.load %arg8[%c0_7, %c1, %c0_8] : memref<2x18x128xbf16, #tpu.memory_space<vmem>>, vector<2x16x128xbf16>
    tpu.vector_store %arg8[%c0_7, %c1, %c0_8], %4 {strides = array<i32>} : memref<2x18x128xbf16, #tpu.memory_space<vmem>>, vector<2x16x128xbf16>,
    %c0_9 = arith.constant 0 : index
    %c0_10 = arith.constant 0 : index
    %c0_11 = arith.constant 0 : index
    %6 = vector.load %arg8[%c0_9, %c0_10, %c0_11] : memref<2x18x128xbf16, #tpu.memory_space<vmem>>, vector<2x16x128xbf16>
    %c0_12 = arith.constant 0 : index
    %c1_13 = arith.constant 1 : index
    %c0_14 = arith.constant 0 : index
    %7 = vector.load %arg8[%c0_12, %c1_13, %c0_14] : memref<2x18x128xbf16, #tpu.memory_space<vmem>>, vector<2x16x128xbf16>
    %c0_15 = arith.constant 0 : index
    %c2 = arith.constant 2 : index
    %c0_16 = arith.constant 0 : index
    %8 = vector.load %arg8[%c0_15, %c2, %c0_16] : memref<2x18x128xbf16, #tpu.memory_space<vmem>>, vector<2x16x128xbf16>
    %9 = tpu.concatenate %6, %7, %8 in 2 : vector<2x16x128xbf16>, vector<2x16x128xbf16>, vector<2x16x128xbf16> -> vector<2x16x384xbf16>
    %10 = vector.shape_cast %9 : vector<2x16x384xbf16> to vector<32x384xbf16>
    %c0_17 = arith.constant 0 : index
    %c0_18 = arith.constant 0 : index
    %11 = vector.load %arg1[%c0_17, %c0_18] : memref<384x128xbf16, #tpu.memory_space<vmem>>, vector<384x128xbf16>
    %cst_19 = arith.constant dense<0.000000e+00> : vector<32x128xf32>
    %12 = tpu.matmul %10, %11, %cst_19 {dimension_numbers = #tpu.dot_dimension_numbers<[1], [0], [0], [1], [0, 0, 1, 1], [], []>} : vector<32x384xbf16>, vector<384x128xbf16>, vector<32x128xf32> -> vector<32x128xf32>
    %cst_20 = arith.constant dense<0.000000e+00> : vector<128xf32>
    %13 = vector.multi_reduction <add>, %12, %cst_20 [0] : vector<32x128xf32> to vector<128xf32>
    %14 = vector.shape_cast %13 : vector<128xf32> to vector<1x128xf32>
    %c8_i32 = arith.constant 8 : i32
    %15 = tpu.dynamic_rotate %14 by %c8_i32 dim 1 : vector<1x128xf32>, i32 -> vector<1x128xf32>
    %16 = arith.addf %14, %15 : vector<1x128xf32>
    %c16_i32 = arith.constant 16 : i32
    %17 = tpu.dynamic_rotate %16 by %c16_i32 dim 1 : vector<1x128xf32>, i32 -> vector<1x128xf32>
    %18 = arith.addf %16, %17 : vector<1x128xf32>
    %c32_i32 = arith.constant 32 : i32
    %19 = tpu.dynamic_rotate %18 by %c32_i32 dim 1 : vector<1x128xf32>, i32 -> vector<1x128xf32>
    %20 = arith.addf %18, %19 : vector<1x128xf32>
    %c64_i32 = arith.constant 64 : i32
    %21 = tpu.dynamic_rotate %20 by %c64_i32 dim 1 : vector<1x128xf32>, i32 -> vector<1x128xf32>
    %22 = arith.addf %20, %21 : vector<1x128xf32>
    %cst_21 = arith.constant 0.001953125 : f32
    %23 = vector.broadcast %cst_21 : f32 to vector<1x128xf32>
    %24 = arith.mulf %22, %23 : vector<1x128xf32>
    %25 = vector.broadcast %24 : vector<1x128xf32> to vector<32x128xf32>
    %26 = arith.subf %12, %25 : vector<32x128xf32>
    %27 = arith.mulf %26, %26 : vector<32x128xf32>
    %cst_22 = arith.constant dense<0.000000e+00> : vector<128xf32>
    %28 = vector.multi_reduction <add>, %27, %cst_22 [0] : vector<32x128xf32> to vector<128xf32>
    %29 = vector.shape_cast %28 : vector<128xf32> to vector<1x128xf32>
    %c8_i32_23 = arith.constant 8 : i32
    %30 = tpu.dynamic_rotate %29 by %c8_i32_23 dim 1 : vector<1x128xf32>, i32 -> vector<1x128xf32>
    %31 = arith.addf %29, %30 : vector<1x128xf32>
    %c16_i32_24 = arith.constant 16 : i32
    %32 = tpu.dynamic_rotate %31 by %c16_i32_24 dim 1 : vector<1x128xf32>, i32 -> vector<1x128xf32>
    %33 = arith.addf %31, %32 : vector<1x128xf32>
    %c32_i32_25 = arith.constant 32 : i32
    %34 = tpu.dynamic_rotate %33 by %c32_i32_25 dim 1 : vector<1x128xf32>, i32 -> vector<1x128xf32>
    %35 = arith.addf %33, %34 : vector<1x128xf32>
    %c64_i32_26 = arith.constant 64 : i32
    %36 = tpu.dynamic_rotate %35 by %c64_i32_26 dim 1 : vector<1x128xf32>, i32 -> vector<1x128xf32>
    %37 = arith.addf %35, %36 : vector<1x128xf32>
    %cst_27 = arith.constant 0.001953125 : f32
    %38 = vector.broadcast %cst_27 : f32 to vector<1x128xf32>
    %39 = arith.mulf %37, %38 : vector<1x128xf32>
    %cst_28 = arith.constant 9.99999974E-6 : f32
    %40 = vector.broadcast %cst_28 : f32 to vector<1x128xf32>
    %41 = arith.addf %39, %40 : vector<1x128xf32>
    %42 = math.rsqrt %41 : vector<1x128xf32>
    %c0_29 = arith.constant 0 : index
    %c0_30 = arith.constant 0 : index
    %43 = vector.load %arg2[%c0_29, %c0_30] : memref<1x128xf32, #tpu.memory_space<vmem>>, vector<1x128xf32>
    %44 = arith.mulf %42, %43 : vector<1x128xf32>
    %45 = vector.broadcast %44 : vector<1x128xf32> to vector<32x128xf32>
    %46 = arith.mulf %26, %45 : vector<32x128xf32>
    %c0_31 = arith.constant 0 : index
    %c0_32 = arith.constant 0 : index
    %47 = vector.load %arg3[%c0_31, %c0_32] : memref<1x128xf32, #tpu.memory_space<vmem>>, vector<1x128xf32>
    %48 = vector.broadcast %47 : vector<1x128xf32> to vector<32x128xf32>
    %49 = arith.addf %46, %48 : vector<32x128xf32>
    %cst_33 = arith.constant 0.000000e+00 : f32
    %50 = vector.broadcast %cst_33 : f32 to vector<32x128xf32>
    %51 = arith.maximumf %49, %50 : vector<32x128xf32>
    %52 = vector.shape_cast %51 : vector<32x128xf32> to vector<2x16x128xf32>
    %53 = arith.truncf %52 : vector<2x16x128xf32> to vector<2x16x128xbf16>
    %c0_34 = arith.constant 0 : index
    %c1_35 = arith.constant 1 : index
    %c0_36 = arith.constant 0 : index
    %54 = vector.load %arg8[%c0_34, %c1_35, %c0_36] : memref<2x18x128xbf16, #tpu.memory_space<vmem>>, vector<2x16x128xbf16>
    tpu.vector_store %arg8[%c0_34, %c1_35, %c0_36], %53 {strides = array<i32>} : memref<2x18x128xbf16, #tpu.memory_space<vmem>>, vector<2x16x128xbf16>,
    %c0_37 = arith.constant 0 : index
    %c0_38 = arith.constant 0 : index
    %c0_39 = arith.constant 0 : index
    %55 = vector.load %arg8[%c0_37, %c0_38, %c0_39] : memref<2x18x128xbf16, #tpu.memory_space<vmem>>, vector<2x16x128xbf16>
    %c0_40 = arith.constant 0 : index
    %c1_41 = arith.constant 1 : index
    %c0_42 = arith.constant 0 : index
    %56 = vector.load %arg8[%c0_40, %c1_41, %c0_42] : memref<2x18x128xbf16, #tpu.memory_space<vmem>>, vector<2x16x128xbf16>
    %c0_43 = arith.constant 0 : index
    %c2_44 = arith.constant 2 : index
    %c0_45 = arith.constant 0 : index
    %57 = vector.load %arg8[%c0_43, %c2_44, %c0_45] : memref<2x18x128xbf16, #tpu.memory_space<vmem>>, vector<2x16x128xbf16>
    %58 = tpu.concatenate %55, %56, %57 in 2 : vector<2x16x128xbf16>, vector<2x16x128xbf16>, vector<2x16x128xbf16> -> vector<2x16x384xbf16>
    %59 = vector.shape_cast %58 : vector<2x16x384xbf16> to vector<32x384xbf16>
    %c0_46 = arith.constant 0 : index
    %c0_47 = arith.constant 0 : index
    %60 = vector.load %arg4[%c0_46, %c0_47] : memref<384x128xbf16, #tpu.memory_space<vmem>>, vector<384x128xbf16>
    %cst_48 = arith.constant dense<0.000000e+00> : vector<32x128xf32>
    %61 = tpu.matmul %59, %60, %cst_48 {dimension_numbers = #tpu.dot_dimension_numbers<[1], [0], [0], [1], [0, 0, 1, 1], [], []>} : vector<32x384xbf16>, vector<384x128xbf16>, vector<32x128xf32> -> vector<32x128xf32>
    %cst_49 = arith.constant dense<0.000000e+00> : vector<128xf32>
    %62 = vector.multi_reduction <add>, %61, %cst_49 [0] : vector<32x128xf32> to vector<128xf32>
    %63 = vector.shape_cast %62 : vector<128xf32> to vector<1x128xf32>
    %c8_i32_50 = arith.constant 8 : i32
    %64 = tpu.dynamic_rotate %63 by %c8_i32_50 dim 1 : vector<1x128xf32>, i32 -> vector<1x128xf32>
    %65 = arith.addf %63, %64 : vector<1x128xf32>
    %c16_i32_51 = arith.constant 16 : i32
    %66 = tpu.dynamic_rotate %65 by %c16_i32_51 dim 1 : vector<1x128xf32>, i32 -> vector<1x128xf32>
    %67 = arith.addf %65, %66 : vector<1x128xf32>
    %c32_i32_52 = arith.constant 32 : i32
    %68 = tpu.dynamic_rotate %67 by %c32_i32_52 dim 1 : vector<1x128xf32>, i32 -> vector<1x128xf32>
    %69 = arith.addf %67, %68 : vector<1x128xf32>
    %c64_i32_53 = arith.constant 64 : i32
    %70 = tpu.dynamic_rotate %69 by %c64_i32_53 dim 1 : vector<1x128xf32>, i32 -> vector<1x128xf32>
    %71 = arith.addf %69, %70 : vector<1x128xf32>
    %cst_54 = arith.constant 0.001953125 : f32
    %72 = vector.broadcast %cst_54 : f32 to vector<1x128xf32>
    %73 = arith.mulf %71, %72 : vector<1x128xf32>
    %74 = vector.broadcast %73 : vector<1x128xf32> to vector<32x128xf32>
    %75 = arith.subf %61, %74 : vector<32x128xf32>
    %76 = arith.mulf %75, %75 : vector<32x128xf32>
    %cst_55 = arith.constant dense<0.000000e+00> : vector<128xf32>
    %77 = vector.multi_reduction <add>, %76, %cst_55 [0] : vector<32x128xf32> to vector<128xf32>
    %78 = vector.shape_cast %77 : vector<128xf32> to vector<1x128xf32>
    %c8_i32_56 = arith.constant 8 : i32
    %79 = tpu.dynamic_rotate %78 by %c8_i32_56 dim 1 : vector<1x128xf32>, i32 -> vector<1x128xf32>
    %80 = arith.addf %78, %79 : vector<1x128xf32>
    %c16_i32_57 = arith.constant 16 : i32
    %81 = tpu.dynamic_rotate %80 by %c16_i32_57 dim 1 : vector<1x128xf32>, i32 -> vector<1x128xf32>
    %82 = arith.addf %80, %81 : vector<1x128xf32>
    %c32_i32_58 = arith.constant 32 : i32
    %83 = tpu.dynamic_rotate %82 by %c32_i32_58 dim 1 : vector<1x128xf32>, i32 -> vector<1x128xf32>
    %84 = arith.addf %82, %83 : vector<1x128xf32>
    %c64_i32_59 = arith.constant 64 : i32
    %85 = tpu.dynamic_rotate %84 by %c64_i32_59 dim 1 : vector<1x128xf32>, i32 -> vector<1x128xf32>
    %86 = arith.addf %84, %85 : vector<1x128xf32>
    %cst_60 = arith.constant 0.001953125 : f32
    %87 = vector.broadcast %cst_60 : f32 to vector<1x128xf32>
    %88 = arith.mulf %86, %87 : vector<1x128xf32>
    %cst_61 = arith.constant 9.99999974E-6 : f32
    %89 = vector.broadcast %cst_61 : f32 to vector<1x128xf32>
    %90 = arith.addf %88, %89 : vector<1x128xf32>
    %91 = math.rsqrt %90 : vector<1x128xf32>
    %c0_62 = arith.constant 0 : index
    %c0_63 = arith.constant 0 : index
    %92 = vector.load %arg5[%c0_62, %c0_63] : memref<1x128xf32, #tpu.memory_space<vmem>>, vector<1x128xf32>
    %93 = arith.mulf %91, %92 : vector<1x128xf32>
    %94 = vector.broadcast %93 : vector<1x128xf32> to vector<32x128xf32>
    %95 = arith.mulf %75, %94 : vector<32x128xf32>
    %c0_64 = arith.constant 0 : index
    %c0_65 = arith.constant 0 : index
    %96 = vector.load %arg6[%c0_64, %c0_65] : memref<1x128xf32, #tpu.memory_space<vmem>>, vector<1x128xf32>
    %97 = vector.broadcast %96 : vector<1x128xf32> to vector<32x128xf32>
    %98 = arith.addf %95, %97 : vector<32x128xf32>
    %99 = vector.shape_cast %0 : vector<2x16x128xf32> to vector<32x128xf32>
    %100 = arith.addf %98, %99 : vector<32x128xf32>
    %cst_66 = arith.constant 0.000000e+00 : f32
    %101 = vector.broadcast %cst_66 : f32 to vector<32x128xf32>
    %102 = arith.maximumf %100, %101 : vector<32x128xf32>
    %103 = vector.shape_cast %102 : vector<32x128xf32> to vector<2x16x128xf32>
    %c0_67 = arith.constant 0 : index
    %c0_68 = arith.constant 0 : index
    %c0_69 = arith.constant 0 : index
    %104 = vector.load %arg7[%c0_67, %c0_68, %c0_69] : memref<2x16x128xf32, #tpu.memory_space<vmem>>, vector<2x16x128xf32>
    tpu.vector_store %arg7[%c0_67, %c0_68, %c0_69], %103 {strides = array<i32>} : memref<2x16x128xf32, #tpu.memory_space<vmem>>, vector<2x16x128xf32>,
    return
  }
}

</mosaic_0001>

<llo_original>
// kernel: basic_block_forward.1
$region0: #{basic_block_forward.1}
  #allocation0 [shape = 'u32[]', space=smem, size = 0x4, offset = 0x4, fixed_abs, tag = 'smem constant byte address 0x4 - core index']
  #allocation1 [shape = 'u32[144,128]{1,0:T(1,128)}', space=vmem, size = 0x12000, scoped, tag = 'internal scratch']
  #allocation2 [shape = 'bf16[2,18,128]{2,1,0:T(8,128)(2,1)}', space=vmem, size = 0x3000, scoped, tag = 'scratch operand']
  %s0 = inlined_call_operand.vmem [shape: f32[2,16,128], index: 0, kind: input, shape index: {}]
  %s1 = inlined_call_operand.vmem [shape: bf16[384,128], index: 1, kind: input, shape index: {}]
  %s2 = inlined_call_operand.vmem [shape: f32[1,128], index: 2, kind: input, shape index: {}]
  %s3 = inlined_call_operand.vmem [shape: f32[1,128], index: 3, kind: input, shape index: {}]
  %s4 = inlined_call_operand.vmem [shape: bf16[384,128], index: 4, kind: input, shape index: {}]
  %s5 = inlined_call_operand.vmem [shape: f32[1,128], index: 5, kind: input, shape index: {}]
  %s6 = inlined_call_operand.vmem [shape: f32[1,128], index: 6, kind: input, shape index: {}]
  %s7 = inlined_call_operand.vmem [shape: f32[2,16,128], index: 7, kind: output, shape index: {}]
  %s8 = sld [smem:[#allocation0]]
  $region38: #{basic_block_forward.1} parent=0
    _
  %s10 = ssub.s32 1, %s8
  %s11 = scalar_select 0, %s10, %s8
  // Predicated region
  $region2: #{basic_block_forward.1} parent=0 // pred_check
    _
  $region3: #{basic_block_forward.1} parent=0 // pred_check_branch
    %13 = sbr.rel (0) target = $region5
  $region4: #{basic_block_forward.1} parent=0 // pred_region
    _
  $region5: #{basic_block_forward.1} parent=0 // pred_fallthru
    _
  // Predicated region
  $region6: #{basic_block_forward.1} parent=0 // pred_check
    _
  $region7: #{basic_block_forward.1} parent=0 // pred_check_branch
    %15 = sbr.rel (0) target = $region9
  $region8: #{basic_block_forward.1} parent=0 // pred_region
    _
  $region9: #{basic_block_forward.1} parent=0 // pred_fallthru
    _
  // Predicated region
  $region10: #{basic_block_forward.1} parent=0 // pred_check
    _
  $region11: #{basic_block_forward.1} parent=0 // pred_check_branch
    %17 = sbr.rel (0) target = $region13
  $region12: #{basic_block_forward.1} parent=0 // pred_region
    _
  $region13: #{basic_block_forward.1} parent=0 // pred_fallthru
    _
  // Predicated region
  $region14: #{basic_block_forward.1} parent=0 // pred_check
    _
  $region15: #{basic_block_forward.1} parent=0 // pred_check_branch
    %19 = sbr.rel (0) target = $region17
  $region16: #{basic_block_forward.1} parent=0 // pred_region
    _
  $region17: #{basic_block_forward.1} parent=0 // pred_fallthru
    _
  // Predicated region
  $region18: #{basic_block_forward.1} parent=0 // pred_check
    _
  $region19: #{basic_block_forward.1} parent=0 // pred_check_branch
    %21 = sbr.rel (0) target = $region21
  $region20: #{basic_block_forward.1} parent=0 // pred_region
    _
  $region21: #{basic_block_forward.1} parent=0 // pred_fallthru
    _
  // Predicated region
  $region22: #{basic_block_forward.1} parent=0 // pred_check
    _
  $region23: #{basic_block_forward.1} parent=0 // pred_check_branch
    %23 = sbr.rel (0) target = $region25
  $region24: #{basic_block_forward.1} parent=0 // pred_region
    _
  $region25: #{basic_block_forward.1} parent=0 // pred_fallthru
    _
  // Predicated region
  $region26: #{basic_block_forward.1} parent=0 // pred_check
    _
  $region27: #{basic_block_forward.1} parent=0 // pred_check_branch
    %25 = sbr.rel (0) target = $region29
  $region28: #{basic_block_forward.1} parent=0 // pred_region
    _
  $region29: #{basic_block_forward.1} parent=0 // pred_fallthru
    _
  %v27 = vld [vmem:[%s0] sm:$0xff]
  %v28 = vld [vmem:[%s0 + $0x8] sm:$0xff]
  %v29 = vld [vmem:[%s0 + $0x10] sm:$0xff]
  %v30 = vld [vmem:[%s0 + $0x18] sm:$0xff]
  %vm31 = vcmask 1040384
  %vm32 = vsmask.f32 256
  %vm33 = vmand %vm31, %vm32
  %v34 = vld [vmem:[#allocation2] sm:$0x1]
  %v35 = vsel %vm33, 0, %v34
  %36 = vst [vmem:[#allocation2] sm:$0x1] %v35
  %v37 = vld [vmem:[#allocation2 + $0xc] sm:$0x1]
  %v38 = vsel %vm33, 0, %v37
  %39 = vst [vmem:[#allocation2 + $0xc] sm:$0x1] %v38
  %vm40 = vsmask.f32 7938
  %vm41 = vmand %vm31, %vm40
  %v42 = vld [vmem:[#allocation2 + $0x8] sm:$0x1]
  %v43 = vsel %vm41, 0, %v42
  %44 = vst [vmem:[#allocation2 + $0x8] sm:$0x1] %v43
  %v45 = vld [vmem:[#allocation2 + $0x14] sm:$0x1]
  %v46 = vsel %vm41, 0, %v45
  %47 = vst [vmem:[#allocation2 + $0x14] sm:$0x1] %v46
  %v48 = vpack.c.bf16 %v28, %v27
  %v49 = vpack.c.bf16 %v30, %v29
  %v52 = vunpack.c.l.b16 %v48
  %v53 = vunpack.c.h.b16 %v48
  %v54 = vunpack.c.l.b16 %v49
  %v55 = vunpack.c.h.b16 %v49
  %v56 = vpack.c.b16 %v52, %v52
  %v57 = vpack.c.b16 %v53, %v53
  %v58 = vpack.c.b16 %v54, %v54
  %v59 = vpack.c.b16 %v55, %v55
  %vm60 = vsmask.f32 4368
  %vm61 = vmor %vm32, %vm60
  %v63 = vshrl.u32 %v56, 16
  %v65 = vrot.slane %v63, 7
  %v66 = vshll.u32 %v56, 16
  %v68 = vor.u32 %v65, %v66
  %v69 = vrot.slane %v65, 4
  %v71 = vshrl.u32 %v57, 16
  %v73 = vrot.slane %v71, 7
  %v74 = vshll.u32 %v57, 16
  %v76 = vor.u32 %v73, %v74
  %v77 = vsel %vm61, %v69, %v76
  %v78 = vrot.slane %v73, 4
  %v80 = vshrl.u32 %v58, 16
  %v82 = vrot.slane %v80, 7
  %v83 = vshll.u32 %v58, 16
  %v85 = vor.u32 %v82, %v83
  %v86 = vrot.slane %v82, 4
  %v88 = vshrl.u32 %v59, 16
  %v90 = vrot.slane %v88, 7
  %v91 = vshll.u32 %v59, 16
  %v93 = vor.u32 %v90, %v91
  %v94 = vsel %vm61, %v86, %v93
  %v95 = vrot.slane %v90, 4
  %vm102 = vcmask 1043456
  %vm103 = vmand %vm102, %vm40
  %v104 = vld [vmem:[#allocation2] sm:$0xf]
  %v105 = vsel %vm103, %v68, %v104
  %106 = vst [vmem:[#allocation2] sm:$0xf] %v105
  %107 = vst [vmem:[#allocation2 + $0x4] sm:$0xf] %v77
  %v108 = vld [vmem:[#allocation2 + $0x8] sm:$0x1]
  %v109 = vsel %vm33, %v78, %v108
  %110 = vst [vmem:[#allocation2 + $0x8] sm:$0x1] %v109
  %v111 = vld [vmem:[#allocation2 + $0xc] sm:$0xf]
  %v112 = vsel %vm103, %v85, %v111
  %113 = vst [vmem:[#allocation2 + $0xc] sm:$0xf] %v112
  %114 = vst [vmem:[#allocation2 + $0x10] sm:$0xf] %v94
  %v115 = vld [vmem:[#allocation2 + $0x14] sm:$0x1]
  %v116 = vsel %vm33, %v95, %v115
  %117 = vst [vmem:[#allocation2 + $0x14] sm:$0x1] %v116
  %v118 = vld [vmem:[#allocation2] sm:$0xf]
  %v119 = vld [vmem:[#allocation2 + $0x4] sm:$0xf]
  %v120 = vld [vmem:[#allocation2 + $0xc] sm:$0xf]
  %v121 = vld [vmem:[#allocation2 + $0x10] sm:$0xf]
  %v122 = vld [vmem:[#allocation2 + $0x8] sm:$0x1]
  %v123 = vld [vmem:[#allocation2 + $0x14] sm:$0x1]
  %v124 = vld [vmem:[#allocation2] sm:$0xe]
  %v125 = vld [vmem:[#allocation2 + $0xc] sm:$0xe]
  %v130 = vunpack.c.l.b16 %v118
  %v131 = vunpack.c.l.b16 %v119
  %v132 = vunpack.c.l.b16 %v120
  %v133 = vunpack.c.l.b16 %v121
  %v134 = vpack.c.b16 %v131, %v130
  %v135 = vpack.c.b16 %v133, %v132
  %v140 = vunpack.c.l.b16 %v122
  %v141 = vunpack.c.l.b16 %v123
  %v142 = vpack.c.b16 %v140, %v140
  %v143 = vpack.c.b16 %v141, %v141
  %vm144 = vsmask.f32 7424
  %v146 = vshrl.u32 %v134, 16
  %v148 = vshll.u32 %v134, 16
  %v150 = vrot.slane %v148, 1
  %v151 = vor.u32 %v146, %v150
  %v153 = vshll.u32 %v142, 16
  %v155 = vrot.slane %v153, 1
  %v156 = vsel %vm144, %v151, %v155
  %v158 = vshrl.u32 %v135, 16
  %v160 = vshll.u32 %v135, 16
  %v162 = vrot.slane %v160, 1
  %v163 = vor.u32 %v158, %v162
  %v165 = vshll.u32 %v143, 16
  %v167 = vrot.slane %v165, 1
  %v168 = vsel %vm144, %v163, %v167
  %v173 = vunpack.c.l.b16 %v124
  %v174 = vunpack.c.l.b16 %v125
  %v175 = vpack.c.b16 %v131, %v173
  %v176 = vpack.c.b16 %v133, %v174
  %vm177 = vcmask 1046528
  %v178 = vrot.slane %v175, 1
  %v179 = vrot.slane %v142, 1
  %v180 = vsel %vm177, %v178, %v179
  %v181 = vrot.slane %v176, 1
  %v182 = vrot.slane %v143, 1
  %v183 = vsel %vm177, %v181, %v182
  %v186 = vld [vmem:[%s1] sm:$0xf]
  %v187 = vld [vmem:[%s1 + $0x4] sm:$0xf]
  %v188 = vld [vmem:[%s1 + $0x8] sm:$0xf]
  %v189 = vld [vmem:[%s1 + $0xc] sm:$0xf]
  %v190 = vld [vmem:[%s1 + $0x10] sm:$0xf]
  %v191 = vld [vmem:[%s1 + $0x14] sm:$0xf]
  %v192 = vld [vmem:[%s1 + $0x18] sm:$0xf]
  %v193 = vld [vmem:[%s1 + $0x1c] sm:$0xf]
  %v194 = vld [vmem:[%s1 + $0x20] sm:$0xf]
  %v195 = vld [vmem:[%s1 + $0x24] sm:$0xf]
  %v196 = vld [vmem:[%s1 + $0x28] sm:$0xf]
  %v197 = vld [vmem:[%s1 + $0x2c] sm:$0xf]
  %v198 = vld [vmem:[%s1 + $0x30] sm:$0xf]
  %v199 = vld [vmem:[%s1 + $0x34] sm:$0xf]
  %v200 = vld [vmem:[%s1 + $0x38] sm:$0xf]
  %v201 = vld [vmem:[%s1 + $0x3c] sm:$0xf]
  %v202 = vld [vmem:[%s1 + $0x40] sm:$0xf]
  %v203 = vld [vmem:[%s1 + $0x44] sm:$0xf]
  %v204 = vld [vmem:[%s1 + $0x48] sm:$0xf]
  %v205 = vld [vmem:[%s1 + $0x4c] sm:$0xf]
  %v206 = vld [vmem:[%s1 + $0x50] sm:$0xf]
  %v207 = vld [vmem:[%s1 + $0x54] sm:$0xf]
  %v208 = vld [vmem:[%s1 + $0x58] sm:$0xf]
  %v209 = vld [vmem:[%s1 + $0x5c] sm:$0xf]
  %v210 = vld [vmem:[%s1 + $0x60] sm:$0xf]
  %v211 = vld [vmem:[%s1 + $0x64] sm:$0xf]
  %v212 = vld [vmem:[%s1 + $0x68] sm:$0xf]
  %v213 = vld [vmem:[%s1 + $0x6c] sm:$0xf]
  %v214 = vld [vmem:[%s1 + $0x70] sm:$0xf]
  %v215 = vld [vmem:[%s1 + $0x74] sm:$0xf]
  %v216 = vld [vmem:[%s1 + $0x78] sm:$0xf]
  %v217 = vld [vmem:[%s1 + $0x7c] sm:$0xf]
  %v218 = vld [vmem:[%s1 + $0x80] sm:$0xf]
  %v219 = vld [vmem:[%s1 + $0x84] sm:$0xf]
  %v220 = vld [vmem:[%s1 + $0x88] sm:$0xf]
  %v221 = vld [vmem:[%s1 + $0x8c] sm:$0xf]
  %v222 = vld [vmem:[%s1 + $0x90] sm:$0xf]
  %v223 = vld [vmem:[%s1 + $0x94] sm:$0xf]
  %v224 = vld [vmem:[%s1 + $0x98] sm:$0xf]
  %v225 = vld [vmem:[%s1 + $0x9c] sm:$0xf]
  %v226 = vld [vmem:[%s1 + $0xa0] sm:$0xf]
  %v227 = vld [vmem:[%s1 + $0xa4] sm:$0xf]
  %v228 = vld [vmem:[%s1 + $0xa8] sm:$0xf]
  %v229 = vld [vmem:[%s1 + $0xac] sm:$0xf]
  %v230 = vld [vmem:[%s1 + $0xb0] sm:$0xf]
  %v231 = vld [vmem:[%s1 + $0xb4] sm:$0xf]
  %v232 = vld [vmem:[%s1 + $0xb8] sm:$0xf]
  %v233 = vld [vmem:[%s1 + $0xbc] sm:$0xf]
  %v282 = vunpack.c.l.b16 %v186
  %v283 = vunpack.c.l.b16 %v187
  %v284 = vunpack.c.l.b16 %v188
  %v285 = vunpack.c.l.b16 %v189
  %v286 = vunpack.c.l.b16 %v190
  %v287 = vunpack.c.l.b16 %v191
  %v288 = vunpack.c.l.b16 %v192
  %v289 = vunpack.c.l.b16 %v193
  %v290 = vunpack.c.l.b16 %v194
  %v291 = vunpack.c.l.b16 %v195
  %v292 = vunpack.c.l.b16 %v196
  %v293 = vunpack.c.l.b16 %v197
  %v294 = vunpack.c.l.b16 %v198
  %v295 = vunpack.c.l.b16 %v199
  %v296 = vunpack.c.l.b16 %v200
  %v297 = vunpack.c.l.b16 %v201
  %v298 = vunpack.c.l.b16 %v202
  %v299 = vunpack.c.l.b16 %v203
  %v300 = vunpack.c.l.b16 %v204
  %v301 = vunpack.c.l.b16 %v205
  %v302 = vunpack.c.l.b16 %v206
  %v303 = vunpack.c.l.b16 %v207
  %v304 = vunpack.c.l.b16 %v208
  %v305 = vunpack.c.l.b16 %v209
  %v306 = vunpack.c.l.b16 %v210
  %v307 = vunpack.c.l.b16 %v211
  %v308 = vunpack.c.l.b16 %v212
  %v309 = vunpack.c.l.b16 %v213
  %v310 = vunpack.c.l.b16 %v214
  %v311 = vunpack.c.l.b16 %v215
  %v312 = vunpack.c.l.b16 %v216
  %v313 = vunpack.c.l.b16 %v217
  %v314 = vunpack.c.l.b16 %v218
  %v315 = vunpack.c.l.b16 %v219
  %v316 = vunpack.c.l.b16 %v220
  %v317 = vunpack.c.l.b16 %v221
  %v318 = vunpack.c.l.b16 %v222
  %v319 = vunpack.c.l.b16 %v223
  %v320 = vunpack.c.l.b16 %v224
  %v321 = vunpack.c.l.b16 %v225
  %v322 = vunpack.c.l.b16 %v226
  %v323 = vunpack.c.l.b16 %v227
  %v324 = vunpack.c.l.b16 %v228
  %v325 = vunpack.c.l.b16 %v229
  %v326 = vunpack.c.l.b16 %v230
  %v327 = vunpack.c.l.b16 %v231
  %v328 = vunpack.c.l.b16 %v232
  %v329 = vunpack.c.l.b16 %v233
  %v330 = vpack.c.b16 %v283, %v282
  %v331 = vpack.c.b16 %v285, %v284
  %v332 = vpack.c.b16 %v287, %v286
  %v333 = vpack.c.b16 %v289, %v288
  %v334 = vpack.c.b16 %v291, %v290
  %v335 = vpack.c.b16 %v293, %v292
  %v336 = vpack.c.b16 %v295, %v294
  %v337 = vpack.c.b16 %v297, %v296
  %v338 = vpack.c.b16 %v299, %v298
  %v339 = vpack.c.b16 %v301, %v300
  %v340 = vpack.c.b16 %v303, %v302
  %v341 = vpack.c.b16 %v305, %v304
  %v342 = vpack.c.b16 %v307, %v306
  %v343 = vpack.c.b16 %v309, %v308
  %v344 = vpack.c.b16 %v311, %v310
  %v345 = vpack.c.b16 %v313, %v312
  %v346 = vpack.c.b16 %v315, %v314
  %v347 = vpack.c.b16 %v317, %v316
  %v348 = vpack.c.b16 %v319, %v318
  %v349 = vpack.c.b16 %v321, %v320
  %v350 = vpack.c.b16 %v323, %v322
  %v351 = vpack.c.b16 %v325, %v324
  %v352 = vpack.c.b16 %v327, %v326
  %v353 = vpack.c.b16 %v329, %v328
  %378 = vmatprep.subr.bf16.mxu0 0
  %379 = vmatpush1.bf16.msra.mxu0 %v330
  %380 = vmatprep.subr.bf16.mxu0 0
  %381 = vmatpush1.bf16.msra.mxu0 %v331
  %382 = vmatprep.subr.bf16.mxu0 0
  %383 = vmatpush1.bf16.msra.mxu0 %v332
  %384 = vmatprep.subr.bf16.mxu0 0
  %385 = vmatpush1.bf16.msra.mxu0 %v333
  %386 = vmatprep.subr.bf16.mxu0 0
  %387 = vmatpush1.bf16.msra.mxu0 %v334
  %388 = vmatprep.subr.bf16.mxu0 0
  %389 = vmatpush1.bf16.msra.mxu0 %v335
  %390 = vmatprep.subr.bf16.mxu0 0
  %391 = vmatpush1.bf16.msra.mxu0 %v336
  %392 = vmatprep.subr.bf16.mxu0 0
  %393 = vmatpush1.bf16.msra.mxu0 %v337
  %394 = vmatprep.subr.bf16.mxu0 0
  %395 = vmatpush1.bf16.msra.mxu0 %v338
  %396 = vmatprep.subr.bf16.mxu0 0
  %397 = vmatpush1.bf16.msra.mxu0 %v339
  %398 = vmatprep.subr.bf16.mxu0 0
  %399 = vmatpush1.bf16.msra.mxu0 %v340
  %400 = vmatprep.subr.bf16.mxu0 0
  %401 = vmatpush1.bf16.msra.mxu0 %v341
  %402 = vmatprep.subr.bf16.mxu0 0
  %403 = vmatpush1.bf16.msra.mxu0 %v342
  %404 = vmatprep.subr.bf16.mxu0 0
  %405 = vmatpush1.bf16.msra.mxu0 %v343
  %406 = vmatprep.subr.bf16.mxu0 0
  %407 = vmatpush1.bf16.msra.mxu0 %v344
  %408 = vmatprep.subr.bf16.mxu0 0
  %409 = vmatpush1.bf16.msra.mxu0 %v345
  %410 = vmatprep.mubr.bf16.mxu0 %v156
  %411 = vmatmul.mubr.bf16.gmra.mrb[0].mxu0 %v134
  %v412 = vpop.f32.mrb[0].mxu0
  %v413 = vadd.f32 0.0, %v412
  %v414 = vpop.f32.mrb[0].mxu0
  %v415 = vpop.f32.mrb[0].mxu0
  %v416 = vadd.f32 0.0, %v415
  %v417 = vpop.f32.mrb[0].mxu0
  %418 = vmatprep.mubr.bf16.mxu0 %v168
  %419 = vmatmul.mubr.bf16.gmra.mrb[0].mxu0 %v135
  %v420 = vpop.f32.mrb[0].mxu0
  %v421 = vadd.f32 0.0, %v420
  %v422 = vpop.f32.mrb[0].mxu0
  %v423 = vpop.f32.mrb[0].mxu0
  %v424 = vadd.f32 0.0, %v423
  %v425 = vpop.f32.mrb[0].mxu0
  %426 = vdwg.mxu0
  %427 = vmatprep.subr.bf16.mxu0 0
  %428 = vmatpush1.bf16.msra.mxu0 %v346
  %429 = vmatprep.subr.bf16.mxu0 0
  %430 = vmatpush1.bf16.msra.mxu0 %v347
  %431 = vmatprep.subr.bf16.mxu0 0
  %432 = vmatpush1.bf16.msra.mxu0 %v348
  %433 = vmatprep.subr.bf16.mxu0 0
  %434 = vmatpush1.bf16.msra.mxu0 %v349
  %435 = vmatprep.subr.bf16.mxu0 0
  %436 = vmatpush1.bf16.msra.mxu0 %v350
  %437 = vmatprep.subr.bf16.mxu0 0
  %438 = vmatpush1.bf16.msra.mxu0 %v351
  %439 = vmatprep.subr.bf16.mxu0 0
  %440 = vmatpush1.bf16.msra.mxu0 %v352
  %441 = vmatprep.subr.bf16.mxu0 0
  %442 = vmatpush1.bf16.msra.mxu0 %v353
  %443 = vmatprep.subr.bf16.mxu0 0
  %444 = vmatpush1.bf16.msra.mxu0 0
  %445 = vmatprep.subr.bf16.mxu0 0
  %446 = vmatpush1.bf16.msra.mxu0 0
  %447 = vmatprep.subr.bf16.mxu0 0
  %448 = vmatpush1.bf16.msra.mxu0 0
  %449 = vmatprep.subr.bf16.mxu0 0
  %450 = vmatpush1.bf16.msra.mxu0 0
  %451 = vmatprep.subr.bf16.mxu0 0
  %452 = vmatpush1.bf16.msra.mxu0 0
  %453 = vmatprep.subr.bf16.mxu0 0
  %454 = vmatpush1.bf16.msra.mxu0 0
  %455 = vmatprep.subr.bf16.mxu0 0
  %456 = vmatpush1.bf16.msra.mxu0 0
  %457 = vmatprep.subr.bf16.mxu0 0
  %458 = vmatpush1.bf16.msra.mxu0 0
  %459 = vmatprep.mubr.bf16.mxu0 0
  %460 = vmatmul.mubr.bf16.gmra.mrb[0].mxu0 %v180
  %v461 = vpop.f32.mrb[0].mxu0
  %v462 = vadd.f32 %v413, %v461
  %v463 = vpop.f32.mrb[0].mxu0
  %v464 = vpop.f32.mrb[0].mxu0
  %v465 = vadd.f32 %v416, %v464
  %v466 = vpop.f32.mrb[0].mxu0
  %467 = vmatprep.mubr.bf16.mxu0 0
  %468 = vmatmul.mubr.bf16.gmra.mrb[0].mxu0 %v183
  %v469 = vpop.f32.mrb[0].mxu0
  %v470 = vadd.f32 %v421, %v469
  %v471 = vpop.f32.mrb[0].mxu0
  %v472 = vpop.f32.mrb[0].mxu0
  %v473 = vadd.f32 %v424, %v472
  %v474 = vpop.f32.mrb[0].mxu0
  %475 = vdwg.mxu0
  %v476 = vadd.f32 %v462, %v465
  %v477 = vadd.f32 %v476, %v470
  %v478 = vadd.f32 %v477, %v473
  %v479 = vrot.slane %v478, 4
  %v480 = vadd.f32 %v478, %v479
  %v481 = vrot.slane %v480, 2
  %v482 = vadd.f32 %v480, %v481
  %v483 = vrot.slane %v482, 1
  %v484 = vadd.f32 %v482, %v483
  %485 = vrot.lane.b32.xlu0 %v484, 8
  %v486 = vpop.permute.xlu0 %485
  %v487 = vadd.f32 %v484, %v486
  %488 = vrot.lane.b32.xlu0 %v487, 16
  %v489 = vpop.permute.xlu0 %488
  %v490 = vadd.f32 %v487, %v489
  %491 = vrot.lane.b32.xlu0 %v490, 32
  %v492 = vpop.permute.xlu0 %491
  %v493 = vadd.f32 %v490, %v492
  %494 = vrot.lane.b32.xlu0 %v493, 64
  %v495 = vpop.permute.xlu0 %494
  %v496 = vadd.f32 %v493, %v495
  %v497 = vmul.f32 %v496, 0.001953125
  %v498 = vlaneseq
  %v499 = vshrl.u32 %v498, 7
  %v500 = vsub.s32 0, %v499
  %v501 = vrot.slane %v497, %v500
  %v502 = vsub.f32 %v462, %v501
  %v503 = vsub.f32 %v465, %v501
  %v504 = vsub.f32 %v470, %v501
  %v505 = vsub.f32 %v473, %v501
  %v506 = vmul.f32 %v502, %v502
  %v507 = vmul.f32 %v503, %v503
  %v508 = vmul.f32 %v504, %v504
  %v509 = vmul.f32 %v505, %v505
  %v510 = vadd.f32 %v506, %v507
  %v511 = vadd.f32 %v510, %v508
  %v512 = vadd.f32 %v511, %v509
  %v513 = vrot.slane %v512, 4
  %v514 = vadd.f32 %v512, %v513
  %v515 = vrot.slane %v514, 2
  %v516 = vadd.f32 %v514, %v515
  %v517 = vrot.slane %v516, 1
  %v518 = vadd.f32 %v516, %v517
  %519 = vrot.lane.b32.xlu0 %v518, 8
  %v520 = vpop.permute.xlu0 %519
  %v521 = vadd.f32 %v518, %v520
  %522 = vrot.lane.b32.xlu0 %v521, 16
  %v523 = vpop.permute.xlu0 %522
  %v524 = vadd.f32 %v521, %v523
  %525 = vrot.lane.b32.xlu0 %v524, 32
  %v526 = vpop.permute.xlu0 %525
  %v527 = vadd.f32 %v524, %v526
  %528 = vrot.lane.b32.xlu0 %v527, 64
  %v529 = vpop.permute.xlu0 %528
  %v530 = vadd.f32 %v527, %v529
  %v531 = vmul.f32 %v530, 0.001953125
  %v532 = vadd.f32 %v531, 1e-05
  %v533 = vrsqrt.pop %v532
  %v534 = vld [vmem:[%s2] sm:$0x1]
  %v535 = vmul.f32 %v533, %v534
  %v536 = vlaneseq
  %v537 = vshrl.u32 %v536, 7
  %v538 = vsub.s32 0, %v537
  %v539 = vrot.slane %v535, %v538
  %v540 = vmul.f32 %v502, %v539
  %v541 = vmul.f32 %v503, %v539
  %v542 = vmul.f32 %v504, %v539
  %v543 = vmul.f32 %v505, %v539
  %v544 = vld [vmem:[%s3] sm:$0x1]
  %v546 = vlaneseq
  %v547 = vshrl.u32 %v546, 7
  %v548 = vsub.s32 0, %v547
  %v549 = vrot.slane %v544, %v548
  %v551 = vadd.f32 %v540, %v549
  %v552 = vadd.f32 %v541, %v549
  %v553 = vadd.f32 %v542, %v549
  %v554 = vadd.f32 %v543, %v549
  %v555 = vmax.f32 %v551, 0.0
  %v556 = vmax.f32 %v552, 0.0
  %v557 = vmax.f32 %v553, 0.0
  %v558 = vmax.f32 %v554, 0.0
  %v559 = vpack.c.bf16 %v556, %v555
  %v560 = vpack.c.bf16 %v558, %v557
  %v563 = vunpack.c.l.b16 %v559
  %v564 = vunpack.c.h.b16 %v559
  %v565 = vunpack.c.l.b16 %v560
  %v566 = vunpack.c.h.b16 %v560
  %v567 = vpack.c.b16 %v563, %v563
  %v568 = vpack.c.b16 %v564, %v564
  %v569 = vpack.c.b16 %v565, %v565
  %v570 = vpack.c.b16 %v566, %v566
  %v572 = vshrl.u32 %v567, 16
  %v574 = vrot.slane %v572, 7
  %v575 = vshll.u32 %v567, 16
  %v577 = vor.u32 %v574, %v575
  %v578 = vrot.slane %v574, 4
  %v580 = vshrl.u32 %v568, 16
  %v582 = vrot.slane %v580, 7
  %v583 = vshll.u32 %v568, 16
  %v585 = vor.u32 %v582, %v583
  %v586 = vsel %vm61, %v578, %v585
  %v587 = vrot.slane %v582, 4
  %v589 = vshrl.u32 %v569, 16
  %v591 = vrot.slane %v589, 7
  %v592 = vshll.u32 %v569, 16
  %v594 = vor.u32 %v591, %v592
  %v595 = vrot.slane %v591, 4
  %v597 = vshrl.u32 %v570, 16
  %v599 = vrot.slane %v597, 7
  %v600 = vshll.u32 %v570, 16
  %v602 = vor.u32 %v599, %v600
  %v603 = vsel %vm61, %v595, %v602
  %v604 = vrot.slane %v599, 4
  %v611 = vsel %vm103, %v577, %v118
  %612 = vst [vmem:[#allocation2] sm:$0xf] %v611
  %613 = vst [vmem:[#allocation2 + $0x4] sm:$0xf] %v586
  %v614 = vld [vmem:[#allocation2 + $0x8] sm:$0x1]
  %v615 = vsel %vm33, %v587, %v614
  %616 = vst [vmem:[#allocation2 + $0x8] sm:$0x1] %v615
  %v617 = vld [vmem:[#allocation2 + $0xc] sm:$0xf]
  %v618 = vsel %vm103, %v594, %v617
  %619 = vst [vmem:[#allocation2 + $0xc] sm:$0xf] %v618
  %620 = vst [vmem:[#allocation2 + $0x10] sm:$0xf] %v603
  %v621 = vld [vmem:[#allocation2 + $0x14] sm:$0x1]
  %v622 = vsel %vm33, %v604, %v621
  %623 = vst [vmem:[#allocation2 + $0x14] sm:$0x1] %v622
  %v624 = vld [vmem:[#allocation2] sm:$0xf]
  %v625 = vld [vmem:[#allocation2 + $0x4] sm:$0xf]
  %v626 = vld [vmem:[#allocation2 + $0xc] sm:$0xf]
  %v627 = vld [vmem:[#allocation2 + $0x10] sm:$0xf]
  %v628 = vld [vmem:[#allocation2 + $0x8] sm:$0x1]
  %v629 = vld [vmem:[#allocation2 + $0x14] sm:$0x1]
  %v630 = vld [vmem:[#allocation2] sm:$0xe]
  %v631 = vld [vmem:[#allocation2 + $0xc] sm:$0xe]
  %v636 = vunpack.c.l.b16 %v624
  %v637 = vunpack.c.l.b16 %v625
  %v638 = vunpack.c.l.b16 %v626
  %v639 = vunpack.c.l.b16 %v627
  %v640 = vpack.c.b16 %v637, %v636
  %v641 = vpack.c.b16 %v639, %v638
  %v646 = vunpack.c.l.b16 %v628
  %v647 = vunpack.c.l.b16 %v629
  %v648 = vpack.c.b16 %v646, %v646
  %v649 = vpack.c.b16 %v647, %v647
  %v651 = vshrl.u32 %v640, 16
  %v653 = vshll.u32 %v640, 16
  %v655 = vrot.slane %v653, 1
  %v656 = vor.u32 %v651, %v655
  %v658 = vshll.u32 %v648, 16
  %v660 = vrot.slane %v658, 1
  %v661 = vsel %vm144, %v656, %v660
  %v663 = vshrl.u32 %v641, 16
  %v665 = vshll.u32 %v641, 16
  %v667 = vrot.slane %v665, 1
  %v668 = vor.u32 %v663, %v667
  %v670 = vshll.u32 %v649, 16
  %v672 = vrot.slane %v670, 1
  %v673 = vsel %vm144, %v668, %v672
  %v678 = vunpack.c.l.b16 %v630
  %v679 = vunpack.c.l.b16 %v631
  %v680 = vpack.c.b16 %v637, %v678
  %v681 = vpack.c.b16 %v639, %v679
  %v682 = vrot.slane %v680, 1
  %v683 = vrot.slane %v648, 1
  %v684 = vsel %vm177, %v682, %v683
  %v685 = vrot.slane %v681, 1
  %v686 = vrot.slane %v649, 1
  %v687 = vsel %vm177, %v685, %v686
  %v690 = vld [vmem:[%s4] sm:$0xf]
  %v691 = vld [vmem:[%s4 + $0x4] sm:$0xf]
  %v692 = vld [vmem:[%s4 + $0x8] sm:$0xf]
  %v693 = vld [vmem:[%s4 + $0xc] sm:$0xf]
  %v694 = vld [vmem:[%s4 + $0x10] sm:$0xf]
  %v695 = vld [vmem:[%s4 + $0x14] sm:$0xf]
  %v696 = vld [vmem:[%s4 + $0x18] sm:$0xf]
  %v697 = vld [vmem:[%s4 + $0x1c] sm:$0xf]
  %v698 = vld [vmem:[%s4 + $0x20] sm:$0xf]
  %v699 = vld [vmem:[%s4 + $0x24] sm:$0xf]
  %v700 = vld [vmem:[%s4 + $0x28] sm:$0xf]
  %v701 = vld [vmem:[%s4 + $0x2c] sm:$0xf]
  %v702 = vld [vmem:[%s4 + $0x30] sm:$0xf]
  %v703 = vld [vmem:[%s4 + $0x34] sm:$0xf]
  %v704 = vld [vmem:[%s4 + $0x38] sm:$0xf]
  %v705 = vld [vmem:[%s4 + $0x3c] sm:$0xf]
  %v706 = vld [vmem:[%s4 + $0x40] sm:$0xf]
  %v707 = vld [vmem:[%s4 + $0x44] sm:$0xf]
  %v708 = vld [vmem:[%s4 + $0x48] sm:$0xf]
  %v709 = vld [vmem:[%s4 + $0x4c] sm:$0xf]
  %v710 = vld [vmem:[%s4 + $0x50] sm:$0xf]
  %v711 = vld [vmem:[%s4 + $0x54] sm:$0xf]
  %v712 = vld [vmem:[%s4 + $0x58] sm:$0xf]
  %v713 = vld [vmem:[%s4 + $0x5c] sm:$0xf]
  %v714 = vld [vmem:[%s4 + $0x60] sm:$0xf]
  %v715 = vld [vmem:[%s4 + $0x64] sm:$0xf]
  %v716 = vld [vmem:[%s4 + $0x68] sm:$0xf]
  %v717 = vld [vmem:[%s4 + $0x6c] sm:$0xf]
  %v718 = vld [vmem:[%s4 + $0x70] sm:$0xf]
  %v719 = vld [vmem:[%s4 + $0x74] sm:$0xf]
  %v720 = vld [vmem:[%s4 + $0x78] sm:$0xf]
  %v721 = vld [vmem:[%s4 + $0x7c] sm:$0xf]
  %v722 = vld [vmem:[%s4 + $0x80] sm:$0xf]
  %v723 = vld [vmem:[%s4 + $0x84] sm:$0xf]
  %v724 = vld [vmem:[%s4 + $0x88] sm:$0xf]
  %v725 = vld [vmem:[%s4 + $0x8c] sm:$0xf]
  %v726 = vld [vmem:[%s4 + $0x90] sm:$0xf]
  %v727 = vld [vmem:[%s4 + $0x94] sm:$0xf]
  %v728 = vld [vmem:[%s4 + $0x98] sm:$0xf]
  %v729 = vld [vmem:[%s4 + $0x9c] sm:$0xf]
  %v730 = vld [vmem:[%s4 + $0xa0] sm:$0xf]
  %v731 = vld [vmem:[%s4 + $0xa4] sm:$0xf]
  %v732 = vld [vmem:[%s4 + $0xa8] sm:$0xf]
  %v733 = vld [vmem:[%s4 + $0xac] sm:$0xf]
  %v734 = vld [vmem:[%s4 + $0xb0] sm:$0xf]
  %v735 = vld [vmem:[%s4 + $0xb4] sm:$0xf]
  %v736 = vld [vmem:[%s4 + $0xb8] sm:$0xf]
  %v737 = vld [vmem:[%s4 + $0xbc] sm:$0xf]
  %v786 = vunpack.c.l.b16 %v690
  %v787 = vunpack.c.l.b16 %v691
  %v788 = vunpack.c.l.b16 %v692
  %v789 = vunpack.c.l.b16 %v693
  %v790 = vunpack.c.l.b16 %v694
  %v791 = vunpack.c.l.b16 %v695
  %v792 = vunpack.c.l.b16 %v696
  %v793 = vunpack.c.l.b16 %v697
  %v794 = vunpack.c.l.b16 %v698
  %v795 = vunpack.c.l.b16 %v699
  %v796 = vunpack.c.l.b16 %v700
  %v797 = vunpack.c.l.b16 %v701
  %v798 = vunpack.c.l.b16 %v702
  %v799 = vunpack.c.l.b16 %v703
  %v800 = vunpack.c.l.b16 %v704
  %v801 = vunpack.c.l.b16 %v705
  %v802 = vunpack.c.l.b16 %v706
  %v803 = vunpack.c.l.b16 %v707
  %v804 = vunpack.c.l.b16 %v708
  %v805 = vunpack.c.l.b16 %v709
  %v806 = vunpack.c.l.b16 %v710
  %v807 = vunpack.c.l.b16 %v711
  %v808 = vunpack.c.l.b16 %v712
  %v809 = vunpack.c.l.b16 %v713
  %v810 = vunpack.c.l.b16 %v714
  %v811 = vunpack.c.l.b16 %v715
  %v812 = vunpack.c.l.b16 %v716
  %v813 = vunpack.c.l.b16 %v717
  %v814 = vunpack.c.l.b16 %v718
  %v815 = vunpack.c.l.b16 %v719
  %v816 = vunpack.c.l.b16 %v720
  %v817 = vunpack.c.l.b16 %v721
  %v818 = vunpack.c.l.b16 %v722
  %v819 = vunpack.c.l.b16 %v723
  %v820 = vunpack.c.l.b16 %v724
  %v821 = vunpack.c.l.b16 %v725
  %v822 = vunpack.c.l.b16 %v726
  %v823 = vunpack.c.l.b16 %v727
  %v824 = vunpack.c.l.b16 %v728
  %v825 = vunpack.c.l.b16 %v729
  %v826 = vunpack.c.l.b16 %v730
  %v827 = vunpack.c.l.b16 %v731
  %v828 = vunpack.c.l.b16 %v732
  %v829 = vunpack.c.l.b16 %v733
  %v830 = vunpack.c.l.b16 %v734
  %v831 = vunpack.c.l.b16 %v735
  %v832 = vunpack.c.l.b16 %v736
  %v833 = vunpack.c.l.b16 %v737
  %v834 = vpack.c.b16 %v787, %v786
  %v835 = vpack.c.b16 %v789, %v788
  %v836 = vpack.c.b16 %v791, %v790
  %v837 = vpack.c.b16 %v793, %v792
  %v838 = vpack.c.b16 %v795, %v794
  %v839 = vpack.c.b16 %v797, %v796
  %v840 = vpack.c.b16 %v799, %v798
  %v841 = vpack.c.b16 %v801, %v800
  %v842 = vpack.c.b16 %v803, %v802
  %v843 = vpack.c.b16 %v805, %v804
  %v844 = vpack.c.b16 %v807, %v806
  %v845 = vpack.c.b16 %v809, %v808
  %v846 = vpack.c.b16 %v811, %v810
  %v847 = vpack.c.b16 %v813, %v812
  %v848 = vpack.c.b16 %v815, %v814
  %v849 = vpack.c.b16 %v817, %v816
  %v850 = vpack.c.b16 %v819, %v818
  %v851 = vpack.c.b16 %v821, %v820
  %v852 = vpack.c.b16 %v823, %v822
  %v853 = vpack.c.b16 %v825, %v824
  %v854 = vpack.c.b16 %v827, %v826
  %v855 = vpack.c.b16 %v829, %v828
  %v856 = vpack.c.b16 %v831, %v830
  %v857 = vpack.c.b16 %v833, %v832
  %882 = vmatprep.subr.bf16.mxu0 0
  %883 = vmatpush1.bf16.msra.mxu0 %v834
  %884 = vmatprep.subr.bf16.mxu0 0
  %885 = vmatpush1.bf16.msra.mxu0 %v835
  %886 = vmatprep.subr.bf16.mxu0 0
  %887 = vmatpush1.bf16.msra.mxu0 %v836
  %888 = vmatprep.subr.bf16.mxu0 0
  %889 = vmatpush1.bf16.msra.mxu0 %v837
  %890 = vmatprep.subr.bf16.mxu0 0
  %891 = vmatpush1.bf16.msra.mxu0 %v838
  %892 = vmatprep.subr.bf16.mxu0 0
  %893 = vmatpush1.bf16.msra.mxu0 %v839
  %894 = vmatprep.subr.bf16.mxu0 0
  %895 = vmatpush1.bf16.msra.mxu0 %v840
  %896 = vmatprep.subr.bf16.mxu0 0
  %897 = vmatpush1.bf16.msra.mxu0 %v841
  %898 = vmatprep.subr.bf16.mxu0 0
  %899 = vmatpush1.bf16.msra.mxu0 %v842
  %900 = vmatprep.subr.bf16.mxu0 0
  %901 = vmatpush1.bf16.msra.mxu0 %v843
  %902 = vmatprep.subr.bf16.mxu0 0
  %903 = vmatpush1.bf16.msra.mxu0 %v844
  %904 = vmatprep.subr.bf16.mxu0 0
  %905 = vmatpush1.bf16.msra.mxu0 %v845
  %906 = vmatprep.subr.bf16.mxu0 0
  %907 = vmatpush1.bf16.msra.mxu0 %v846
  %908 = vmatprep.subr.bf16.mxu0 0
  %909 = vmatpush1.bf16.msra.mxu0 %v847
  %910 = vmatprep.subr.bf16.mxu0 0
  %911 = vmatpush1.bf16.msra.mxu0 %v848
  %912 = vmatprep.subr.bf16.mxu0 0
  %913 = vmatpush1.bf16.msra.mxu0 %v849
  %914 = vmatprep.mubr.bf16.mxu0 %v661
  %915 = vmatmul.mubr.bf16.gmra.mrb[0].mxu0 %v640
  %v916 = vpop.f32.mrb[0].mxu0
  %v917 = vadd.f32 0.0, %v916
  %v918 = vpop.f32.mrb[0].mxu0
  %v919 = vpop.f32.mrb[0].mxu0
  %v920 = vadd.f32 0.0, %v919
  %v921 = vpop.f32.mrb[0].mxu0
  %922 = vmatprep.mubr.bf16.mxu0 %v673
  %923 = vmatmul.mubr.bf16.gmra.mrb[0].mxu0 %v641
  %v924 = vpop.f32.mrb[0].mxu0
  %v925 = vadd.f32 0.0, %v924
  %v926 = vpop.f32.mrb[0].mxu0
  %v927 = vpop.f32.mrb[0].mxu0
  %v928 = vadd.f32 0.0, %v927
  %v929 = vpop.f32.mrb[0].mxu0
  %930 = vdwg.mxu0
  %931 = vmatprep.subr.bf16.mxu0 0
  %932 = vmatpush1.bf16.msra.mxu0 %v850
  %933 = vmatprep.subr.bf16.mxu0 0
  %934 = vmatpush1.bf16.msra.mxu0 %v851
  %935 = vmatprep.subr.bf16.mxu0 0
  %936 = vmatpush1.bf16.msra.mxu0 %v852
  %937 = vmatprep.subr.bf16.mxu0 0
  %938 = vmatpush1.bf16.msra.mxu0 %v853
  %939 = vmatprep.subr.bf16.mxu0 0
  %940 = vmatpush1.bf16.msra.mxu0 %v854
  %941 = vmatprep.subr.bf16.mxu0 0
  %942 = vmatpush1.bf16.msra.mxu0 %v855
  %943 = vmatprep.subr.bf16.mxu0 0
  %944 = vmatpush1.bf16.msra.mxu0 %v856
  %945 = vmatprep.subr.bf16.mxu0 0
  %946 = vmatpush1.bf16.msra.mxu0 %v857
  %947 = vmatprep.subr.bf16.mxu0 0
  %948 = vmatpush1.bf16.msra.mxu0 0
  %949 = vmatprep.subr.bf16.mxu0 0
  %950 = vmatpush1.bf16.msra.mxu0 0
  %951 = vmatprep.subr.bf16.mxu0 0
  %952 = vmatpush1.bf16.msra.mxu0 0
  %953 = vmatprep.subr.bf16.mxu0 0
  %954 = vmatpush1.bf16.msra.mxu0 0
  %955 = vmatprep.subr.bf16.mxu0 0
  %956 = vmatpush1.bf16.msra.mxu0 0
  %957 = vmatprep.subr.bf16.mxu0 0
  %958 = vmatpush1.bf16.msra.mxu0 0
  %959 = vmatprep.subr.bf16.mxu0 0
  %960 = vmatpush1.bf16.msra.mxu0 0
  %961 = vmatprep.subr.bf16.mxu0 0
  %962 = vmatpush1.bf16.msra.mxu0 0
  %963 = vmatprep.mubr.bf16.mxu0 0
  %964 = vmatmul.mubr.bf16.gmra.mrb[0].mxu0 %v684
  %v965 = vpop.f32.mrb[0].mxu0
  %v966 = vadd.f32 %v917, %v965
  %v967 = vpop.f32.mrb[0].mxu0
  %v968 = vpop.f32.mrb[0].mxu0
  %v969 = vadd.f32 %v920, %v968
  %v970 = vpop.f32.mrb[0].mxu0
  %971 = vmatprep.mubr.bf16.mxu0 0
  %972 = vmatmul.mubr.bf16.gmra.mrb[0].mxu0 %v687
  %v973 = vpop.f32.mrb[0].mxu0
  %v974 = vadd.f32 %v925, %v973
  %v975 = vpop.f32.mrb[0].mxu0
  %v976 = vpop.f32.mrb[0].mxu0
  %v977 = vadd.f32 %v928, %v976
  %v978 = vpop.f32.mrb[0].mxu0
  %979 = vdwg.mxu0
  %v980 = vadd.f32 %v966, %v969
  %v981 = vadd.f32 %v980, %v974
  %v982 = vadd.f32 %v981, %v977
  %v983 = vrot.slane %v982, 4
  %v984 = vadd.f32 %v982, %v983
  %v985 = vrot.slane %v984, 2
  %v986 = vadd.f32 %v984, %v985
  %v987 = vrot.slane %v986, 1
  %v988 = vadd.f32 %v986, %v987
  %989 = vrot.lane.b32.xlu0 %v988, 8
  %v990 = vpop.permute.xlu0 %989
  %v991 = vadd.f32 %v988, %v990
  %992 = vrot.lane.b32.xlu0 %v991, 16
  %v993 = vpop.permute.xlu0 %992
  %v994 = vadd.f32 %v991, %v993
  %995 = vrot.lane.b32.xlu0 %v994, 32
  %v996 = vpop.permute.xlu0 %995
  %v997 = vadd.f32 %v994, %v996
  %998 = vrot.lane.b32.xlu0 %v997, 64
  %v999 = vpop.permute.xlu0 %998
  %v1000 = vadd.f32 %v997, %v999
  %v1001 = vmul.f32 %v1000, 0.001953125
  %v1002 = vlaneseq
  %v1003 = vshrl.u32 %v1002, 7
  %v1004 = vsub.s32 0, %v1003
  %v1005 = vrot.slane %v1001, %v1004
  %v1006 = vsub.f32 %v966, %v1005
  %v1007 = vsub.f32 %v969, %v1005
  %v1008 = vsub.f32 %v974, %v1005
  %v1009 = vsub.f32 %v977, %v1005
  %v1010 = vmul.f32 %v1006, %v1006
  %v1011 = vmul.f32 %v1007, %v1007
  %v1012 = vmul.f32 %v1008, %v1008
  %v1013 = vmul.f32 %v1009, %v1009
  %v1014 = vadd.f32 %v1010, %v1011
  %v1015 = vadd.f32 %v1014, %v1012
  %v1016 = vadd.f32 %v1015, %v1013
  %v1017 = vrot.slane %v1016, 4
  %v1018 = vadd.f32 %v1016, %v1017
  %v1019 = vrot.slane %v1018, 2
  %v1020 = vadd.f32 %v1018, %v1019
  %v1021 = vrot.slane %v1020, 1
  %v1022 = vadd.f32 %v1020, %v1021
  %1023 = vrot.lane.b32.xlu0 %v1022, 8
  %v1024 = vpop.permute.xlu0 %1023
  %v1025 = vadd.f32 %v1022, %v1024
  %1026 = vrot.lane.b32.xlu0 %v1025, 16
  %v1027 = vpop.permute.xlu0 %1026
  %v1028 = vadd.f32 %v1025, %v1027
  %1029 = vrot.lane.b32.xlu0 %v1028, 32
  %v1030 = vpop.permute.xlu0 %1029
  %v1031 = vadd.f32 %v1028, %v1030
  %1032 = vrot.lane.b32.xlu0 %v1031, 64
  %v1033 = vpop.permute.xlu0 %1032
  %v1034 = vadd.f32 %v1031, %v1033
  %v1035 = vmul.f32 %v1034, 0.001953125
  %v1036 = vadd.f32 %v1035, 1e-05
  %v1037 = vrsqrt.pop %v1036
  %v1038 = vld [vmem:[%s5] sm:$0x1]
  %v1039 = vmul.f32 %v1037, %v1038
  %v1040 = vlaneseq
  %v1041 = vshrl.u32 %v1040, 7
  %v1042 = vsub.s32 0, %v1041
  %v1043 = vrot.slane %v1039, %v1042
  %v1044 = vmul.f32 %v1006, %v1043
  %v1045 = vmul.f32 %v1007, %v1043
  %v1046 = vmul.f32 %v1008, %v1043
  %v1047 = vmul.f32 %v1009, %v1043
  %v1048 = vld [vmem:[%s6] sm:$0x1]
  %v1050 = vlaneseq
  %v1051 = vshrl.u32 %v1050, 7
  %v1052 = vsub.s32 0, %v1051
  %v1053 = vrot.slane %v1048, %v1052
  %v1055 = vadd.f32 %v1044, %v1053
  %v1056 = vadd.f32 %v1045, %v1053
  %v1057 = vadd.f32 %v1046, %v1053
  %v1058 = vadd.f32 %v1047, %v1053
  %v1059 = vadd.f32 %v1055, %v27
  %v1060 = vadd.f32 %v1056, %v28
  %v1061 = vadd.f32 %v1057, %v29
  %v1062 = vadd.f32 %v1058, %v30
  %v1063 = vmax.f32 %v1059, 0.0
  %v1064 = vmax.f32 %v1060, 0.0
  %v1065 = vmax.f32 %v1061, 0.0
  %v1066 = vmax.f32 %v1062, 0.0
  %1067 = vst [vmem:[%s7] sm:$0xff] %v1063
  %1068 = vst [vmem:[%s7 + $0x8] sm:$0xff] %v1064
  %1069 = vst [vmem:[%s7 + $0x10] sm:$0xff] %v1065
  %1070 = vst [vmem:[%s7 + $0x18] sm:$0xff] %v1066
  // Predicated region
  $region30: #{basic_block_forward.1} parent=0 // pred_check
    _
  $region31: #{basic_block_forward.1} parent=0 // pred_check_branch
    %1072 = sbr.rel (0) target = $region33
  $region32: #{basic_block_forward.1} parent=0 // pred_region
    _
  $region33: #{basic_block_forward.1} parent=0 // pred_fallthru
    _
  // Predicated region
  $region34: #{basic_block_forward.1} parent=0 // pred_check
    _
  $region35: #{basic_block_forward.1} parent=0 // pred_check_branch
    %1074 = sbr.rel (0) target = $region37
  $region36: #{basic_block_forward.1} parent=0 // pred_region
    _
  $region37: #{basic_block_forward.1} parent=0 // pred_fallthru
    _

</llo_original>
